<compile_context>
chip_gen: v5e
topology: v5e:2x2
jax: 0.10.0
libtpu: 0.0.40
codegen_flags: <defaults>
</compile_context>

<pallas_src>
import functools

import jax
import jax.numpy as jnp
from jax import lax
from jax.experimental import pallas as pl
from jax.experimental.pallas import tpu as pltpu


def _round_up(x, m):
    return (x + m - 1) // m * m


# --------------------------------------------------------------------------
# Pallas kernel 1: row-tiled fused matmul + bias (bf16 MXU, f32 accumulate)
# --------------------------------------------------------------------------
def _matmul_bias_kernel(x_ref, w_ref, b_ref, o_ref):
    o_ref[...] = (
        jnp.dot(x_ref[...].astype(jnp.bfloat16),
                w_ref[...].astype(jnp.bfloat16),
                preferred_element_type=jnp.float32)
        + b_ref[...]
    )


def matmul_bias(x, w, b, block_rows=256):
    """x:(m,k) @ w:(k,n) + b:(1,n) -> (m,n) f32, tiled & pipelined over rows."""
    m, k = x.shape
    k2, n = w.shape
    assert k == k2 and b.shape == (1, n)
    m_pad = _round_up(m, 8)
    tr = m_pad if m_pad <= block_rows else block_rows
    m_pad = _round_up(m_pad, tr)
    if m_pad != m:
        x = jnp.pad(x, ((0, m_pad - m), (0, 0)))
    out = pl.pallas_call(
        _matmul_bias_kernel,
        out_shape=jax.ShapeDtypeStruct((m_pad, n), jnp.float32),
        grid=(m_pad // tr,),
        in_specs=[
            pl.BlockSpec((tr, k), lambda i: (i, 0)),
            pl.BlockSpec((k, n), lambda i: (0, 0)),   # weights stay resident
            pl.BlockSpec((1, n), lambda i: (0, 0)),
        ],
        out_specs=pl.BlockSpec((tr, n), lambda i: (i, 0)),
        compiler_params=pltpu.CompilerParams(
            dimension_semantics=("parallel",),
            vmem_limit_bytes=48 * 1024 * 1024),
    )(x, w, b)
    return out[:m] if m_pad != m else out


# --------------------------------------------------------------------------
# Pallas kernel 2: fused bidirectional LSTM recurrence for one layer.
# Input gate pre-activations (x @ W_ih^T + b_ih + b_hh) are precomputed with
# matmul_bias; this kernel keeps w_hh (both directions) and the h/c state
# resident and walks the sequence with a single fori_loop (fwd + bwd per step).
# PyTorch nn.LSTM gate order: i, f, g, o.
# --------------------------------------------------------------------------
def _bilstm_rec_kernel(xf_ref, xb_ref, whf_ref, whb_ref, of_ref, ob_ref, *, hidden):
    seq = xf_ref.shape[0]

    def cell(x_row, h, c, whh_ref):
        # recurrent matmul kept in f32 (small; precision matters on the
        # recurrent path), accumulation in f32.
        gates = x_row + jnp.dot(h, whh_ref[...], preferred_element_type=jnp.float32)
        i = jax.nn.sigmoid(gates[:, 0:hidden])
        f = jax.nn.sigmoid(gates[:, hidden:2 * hidden])
        g = jnp.tanh(gates[:, 2 * hidden:3 * hidden])
        o = jax.nn.sigmoid(gates[:, 3 * hidden:4 * hidden])
        c = f * c + i * g
        h = o * jnp.tanh(c)
        return h, c

    def step(t, carry):
        h_f, c_f, h_b, c_b = carry
        h_f, c_f = cell(xf_ref[pl.ds(t, 1), :], h_f, c_f, whf_ref)
        of_ref[pl.ds(t, 1), :] = h_f
        tb = seq - 1 - t
        h_b, c_b = cell(xb_ref[pl.ds(tb, 1), :], h_b, c_b, whb_ref)
        ob_ref[pl.ds(tb, 1), :] = h_b
        return (h_f, c_f, h_b, c_b)

    z = jnp.zeros((1, hidden), jnp.float32)
    lax.fori_loop(0, seq, step, (z, z, z, z))


def bilstm_layer(x, layer, hidden):
    seq = x.shape[0]
    g4 = 4 * hidden
    # fused fwd+bwd input projection on the MXU (b_ih + b_hh pre-folded).
    proj = matmul_bias(x, layer["w_ih"], layer["b_ih"])          # (seq, 8H)
    xf = proj[:, :g4]
    xb = proj[:, g4:]
    h_f, h_b = pl.pallas_call(
        functools.partial(_bilstm_rec_kernel, hidden=hidden),
        out_shape=(jax.ShapeDtypeStruct((seq, hidden), jnp.float32),
                   jax.ShapeDtypeStruct((seq, hidden), jnp.float32)),
        grid=(1,),
        in_specs=[pl.BlockSpec((seq, g4), lambda i: (0, 0)),
                  pl.BlockSpec((seq, g4), lambda i: (0, 0)),
                  pl.BlockSpec((hidden, g4), lambda i: (0, 0)),
                  pl.BlockSpec((hidden, g4), lambda i: (0, 0))],
        out_specs=(pl.BlockSpec((seq, hidden), lambda i: (0, 0)),
                   pl.BlockSpec((seq, hidden), lambda i: (0, 0))),
        compiler_params=pltpu.CompilerParams(
            vmem_limit_bytes=48 * 1024 * 1024),
    )(xf, xb, layer["w_hh_f"], layer["w_hh_b"])
    return jnp.concatenate([h_f, h_b], axis=-1)                  # (seq, 2H)


# --------------------------------------------------------------------------
# Pallas kernel 3: tiled pairwise MLP edge scorer.
#   score[h, m] = w_out . tanh(head_proj[h] + dep_proj[m]) + b_out
# Grid = (modifier_blocks, head_blocks); head axis is the reduction axis for a
# per-column (per-modifier) online log-sum-exp (running max + running sum),
# which calc_loss consumes. head/dep projections are precomputed by matmul_bias.
# --------------------------------------------------------------------------
def _edge_scorer_kernel(head_ref, dep_ref, wo_ref, bo_ref,
                        score_ref, lse_ref, m_sc, l_sc, *, n_valid, block_h):
    hb = pl.program_id(1)

    @pl.when(hb == 0)
    def _init():
        m_sc[...] = jnp.full(m_sc.shape, -jnp.inf, m_sc.dtype)
        l_sc[...] = jnp.zeros(l_sc.shape, l_sc.dtype)

    head = head_ref[...]                                       # (TH, M)
    dep = dep_ref[...]                                         # (TM, M)
    act = jnp.tanh(head[:, None, :] + dep[None, :, :])         # (TH, TM, M)
    # TODO(synk): the w_out contraction stays as a VPU/XLU lane reduce; routing
    # it through the MXU as (TH*TM, M) @ (M, 1) yields a degenerate 1-lane
    # output layout at these M sizes, and the EUP tanh dominates this tile.
    scores = jnp.sum(act * wo_ref[...], axis=-1) + bo_ref[0, 0]  # (TH, TM)
    score_ref[...] = scores

    # stable online column log-sum-exp across head blocks (mask padded rows).
    row_ids = hb * block_h + lax.broadcasted_iota(jnp.int32, scores.shape, 0)
    valid = row_ids < n_valid
    tile_max = jnp.max(jnp.where(valid, scores, -jnp.inf), axis=0, keepdims=True)
    m_new = jnp.maximum(m_sc[...], tile_max)
    p = jnp.where(valid, jnp.exp(scores - m_new), 0.0)
    l_sc[...] = l_sc[...] * jnp.exp(m_sc[...] - m_new) + jnp.sum(p, axis=0,
                                                                 keepdims=True)
    m_sc[...] = m_new

    @pl.when(hb == pl.num_programs(1) - 1)
    def _finish():
        lse_ref[...] = m_sc[...] + jnp.log(l_sc[...])


def edge_scorer(head_proj, dep_proj, w_out, b_out, n_valid):
    n_pad, m = head_proj.shape
    tile = n_pad if n_pad <= 128 else 128
    grid = (n_pad // tile, n_pad // tile)     # (modifier blocks, head blocks)
    kernel = functools.partial(_edge_scorer_kernel, n_valid=n_valid, block_h=tile)
    return pl.pallas_call(
        kernel,
        out_shape=(jax.ShapeDtypeStruct((n_pad, n_pad), jnp.float32),
                   jax.ShapeDtypeStruct((1, n_pad), jnp.float32)),
        grid=grid,
        in_specs=[
            pl.BlockSpec((tile, m), lambda mb, hb: (hb, 0)),    # head slab
            pl.BlockSpec((tile, m), lambda mb, hb: (mb, 0)),    # dep slab (resident per mb)
            pl.BlockSpec((1, m), lambda mb, hb: (0, 0)),        # w_out row
            pl.BlockSpec(memory_space=pltpu.MemorySpace.SMEM),  # b_out scalar
        ],
        out_specs=(
            pl.BlockSpec((tile, tile), lambda mb, hb: (hb, mb)),   # (head, mod) tile
            pl.BlockSpec((1, tile), lambda mb, hb: (0, mb)),       # per-column lse
        ),
        scratch_shapes=[pltpu.VMEM((1, tile), jnp.float32),     # running max
                        pltpu.VMEM((1, tile), jnp.float32)],    # running sum
        compiler_params=pltpu.CompilerParams(
            dimension_semantics=("parallel", "arbitrary"),
            vmem_limit_bytes=48 * 1024 * 1024),
    )(head_proj, dep_proj, w_out, b_out)


# --------------------------------------------------------------------------
# Parameter construction (deterministic, synthetic — no checkpoint loading).
# Weights are stored pre-transposed / pre-fused for the kernels above.
# --------------------------------------------------------------------------
def _uniform(key, shape, scale):
    return jax.random.uniform(key, shape, jnp.float32, -scale, scale)


def init_params(key, vocab_size, pos_size, word_dim, pos_dim, hidden, mlp):
    input_dim = word_dim + pos_dim
    keys = iter(jax.random.split(key, 16))
    nk = lambda: next(keys)

    params = {
        "word_table": jax.random.normal(nk(), (vocab_size, word_dim), jnp.float32),
        "pos_table": jax.random.normal(nk(), (pos_size, pos_dim), jnp.float32),
    }

    s = 1.0 / (hidden ** 0.5)
    layers = []
    in_dim = input_dim
    for _ in range(2):
        layers.append({
            # nn.LSTM stores w_ih:(4H,in)/w_hh:(4H,H) per direction; here they
            # are pre-transposed, fwd+bwd input projections fused along the
            # output dim, and b_ih + b_hh folded into one bias row.
            "w_ih": _uniform(nk(), (in_dim, 8 * hidden), s),
            "b_ih": _uniform(nk(), (1, 8 * hidden), s),
            "w_hh_f": _uniform(nk(), (hidden, 4 * hidden), s),
            "w_hh_b": _uniform(nk(), (hidden, 4 * hidden), s),
        })
        in_dim = 2 * hidden
    params["lstm"] = layers

    sm = 1.0 / (mlp ** 0.5)
    params["scorer"] = {
        # W_head / W_dep fused along output dim; b_mlp folded into the dep half.
        "w_hd": _uniform(nk(), (2 * hidden, 2 * mlp), sm),
        "b_hd": jnp.concatenate([jnp.zeros((1, mlp), jnp.float32),
                                 _uniform(nk(), (1, mlp), sm)], axis=1),
        "w_out": _uniform(nk(), (1, mlp), sm),
        "b_out": _uniform(nk(), (1, 1), sm),
    }
    return params


# --------------------------------------------------------------------------
# Forward pass mirroring DependencyParser.forward
# --------------------------------------------------------------------------
def dependency_parser_forward(params, words_idx, poss_idx, true_tree_heads,
                              hidden_size, train=False, is_labeled=True):
    # nn.Embedding lookups (glue gathers in plain JAX).
    word_embeds = params["word_table"][words_idx]              # (seq, word_dim)
    pos_embeds = params["pos_table"][poss_idx]                 # (seq, pos_dim)
    embeds = jnp.concatenate([word_embeds, pos_embeds], -1)    # (seq, input_dim)

    # 2-layer bidirectional LSTM (batch of 1 squeezed away, as in the module).
    out = embeds
    for layer in params["lstm"]:
        out = bilstm_layer(out, layer, hidden_size)
    lstm_out = out                                             # (seq, 2H)
    n = lstm_out.shape[0]

    # TODO(synk): dropout inside the Score MLP when train=True is not modeled.
    sc = params["scorer"]
    m = sc["w_out"].shape[1]
    n_pad = _round_up(n, 8) if n <= 128 else _round_up(n, 128)
    lstm_pad = jnp.pad(lstm_out, ((0, n_pad - n), (0, 0)))

    # fused head/dep projection on the MXU, then the tiled pairwise scorer.
    proj = matmul_bias(lstm_pad, sc["w_hd"], sc["b_hd"])       # (n_pad, 2M)
    head_proj = proj[:, :m]
    dep_proj = proj[:, m:]
    score_pad, lse_pad = edge_scorer(head_proj, dep_proj, sc["w_out"],
                                     sc["b_out"], n_valid=n)
    score_matrix = score_pad[:n, :n]                           # (head, modifier)
    lse = lse_pad[0, :n]                                       # log sum_h exp(s[h, m])

    # TODO(synk): decode_mst (Chu-Liu-Edmonds) is a data-dependent graph
    # algorithm with no clean Pallas equivalent; greedy per-modifier argmax head
    # selection (diagonal masked, root forced to 0) is used as the prediction.
    neg = jnp.finfo(jnp.float32).min
    masked = jnp.where(jnp.eye(n, dtype=bool), neg, score_matrix)
    prediction = jnp.argmax(masked, axis=0).at[0].set(0)

    loss = None
    if is_labeled:
        # calc_loss semantics with log-sum-exp stabilization:
        # loss_i = -log(exp(s[true_i, i]) / sum_h exp(s[h, i])) = lse_i - s[true_i, i]
        cols = jnp.arange(1, n)
        gold = score_matrix[true_tree_heads[1:], cols]
        loss = jnp.mean(lse[1:] - gold)
    return prediction, loss, score_matrix


# --------------------------------------------------------------------------
if __name__ == "__main__":
    # Small deterministic configuration; feature dims 128-aligned for lane
    # density (2H = 256, 4H = 512, MLP = 128), seq a multiple of 8.
    VOCAB, POS_VOCAB = 50, 12
    WORD_DIM, POS_DIM = 64, 64            # input_dim = 128
    HIDDEN, HIDDEN_MLP = 128, 128
    SEQ = 8

    root = jax.random.PRNGKey(0)
    kp, kw, kt, kh = jax.random.split(root, 4)

    params = init_params(kp, VOCAB, POS_VOCAB, WORD_DIM, POS_DIM,
                         HIDDEN, HIDDEN_MLP)

    words_idx = jax.random.randint(kw, (SEQ,), 0, VOCAB, dtype=jnp.int32)
    poss_idx = jax.random.randint(kt, (SEQ,), 0, POS_VOCAB, dtype=jnp.int32)
    true_heads = jax.random.randint(kh, (SEQ,), 0, SEQ, dtype=jnp.int32)

    prediction, loss, score_matrix = dependency_parser_forward(
        params, words_idx, poss_idx, true_heads,
        hidden_size=HIDDEN, train=False, is_labeled=True)

    jax.block_until_ready((prediction, loss, score_matrix))
    assert prediction.shape == (SEQ,)
    assert score_matrix.shape == (SEQ, SEQ)
    assert bool(jnp.isfinite(loss))
    print("KERNEL_OK")
</pallas_src>

<mosaic_0001>
module attributes {stable_mosaic.version = 11 : i64} {
  func.func @_matmul_bias_kernel(%arg0: i32, %arg1: memref<8x128xf32, #tpu.memory_space<vmem>>, %arg2: memref<128x1024xf32, #tpu.memory_space<vmem>>, %arg3: memref<1x1024xf32, #tpu.memory_space<vmem>>, %arg4: memref<8x1024xf32, #tpu.memory_space<vmem>>) attributes {dimension_semantics = [#tpu.dimension_semantics<parallel>], iteration_bounds = array<i64: 1>, scalar_prefetch = 0 : i64, scratch_operands = 0 : i64, tpu.core_type = #tpu.core_type<tc>, window_params = [{transform_indices = @transform_0, window_bounds = array<i64: 8, 128>}, {pipeline_mode = #tpu.pipeline_mode<synchronous>, transform_indices = @transform_1, window_bounds = array<i64: 128, 1024>}, {pipeline_mode = #tpu.pipeline_mode<synchronous>, transform_indices = @transform_2, window_bounds = array<i64: 1, 1024>}, {transform_indices = @transform_3, window_bounds = array<i64: 8, 1024>}]} {
    %c0 = arith.constant 0 : index
    %c0_0 = arith.constant 0 : index
    %0 = vector.load %arg1[%c0, %c0_0] : memref<8x128xf32, #tpu.memory_space<vmem>>, vector<8x128xf32>
    %1 = arith.truncf %0 : vector<8x128xf32> to vector<8x128xbf16>
    %c0_1 = arith.constant 0 : index
    %c0_2 = arith.constant 0 : index
    %2 = vector.load %arg2[%c0_1, %c0_2] : memref<128x1024xf32, #tpu.memory_space<vmem>>, vector<128x1024xf32>
    %3 = arith.truncf %2 : vector<128x1024xf32> to vector<128x1024xbf16>
    %cst = arith.constant dense<0.000000e+00> : vector<8x1024xf32>
    %4 = tpu.matmul %1, %3, %cst {dimension_numbers = #tpu.dot_dimension_numbers<[1], [0], [0], [1], [0, 0, 1, 1], [], []>} : vector<8x128xbf16>, vector<128x1024xbf16>, vector<8x1024xf32> -> vector<8x1024xf32>
    %c0_3 = arith.constant 0 : index
    %c0_4 = arith.constant 0 : index
    %5 = vector.load %arg3[%c0_3, %c0_4] : memref<1x1024xf32, #tpu.memory_space<vmem>>, vector<1x1024xf32>
    %6 = vector.broadcast %5 : vector<1x1024xf32> to vector<8x1024xf32>
    %7 = arith.addf %4, %6 : vector<8x1024xf32>
    %c0_5 = arith.constant 0 : index
    %c0_6 = arith.constant 0 : index
    %8 = vector.load %arg4[%c0_5, %c0_6] : memref<8x1024xf32, #tpu.memory_space<vmem>>, vector<8x1024xf32>
    tpu.vector_store %arg4[%c0_5, %c0_6], %7 {strides = array<i32>} : memref<8x1024xf32, #tpu.memory_space<vmem>>, vector<8x1024xf32>,
    return
  }
  func.func @transform_0(%arg0: i32) -> (i32, i32) {
    %c0_i32 = arith.constant 0 : i32
    %c0_i32_0 = arith.constant 0 : i32
    return %arg0, %c0_i32 : i32, i32
  }
  func.func @transform_1(%arg0: i32) -> (i32, i32) {
    %c0_i32 = arith.constant 0 : i32
    %c0_i32_0 = arith.constant 0 : i32
    %c0_i32_1 = arith.constant 0 : i32
    return %c0_i32, %c0_i32_0 : i32, i32
  }
  func.func @transform_2(%arg0: i32) -> (i32, i32) {
    %c0_i32 = arith.constant 0 : i32
    %c0_i32_0 = arith.constant 0 : i32
    %c0_i32_1 = arith.constant 0 : i32
    return %c0_i32, %c0_i32_0 : i32, i32
  }
  func.func @transform_3(%arg0: i32) -> (i32, i32) {
    %c0_i32 = arith.constant 0 : i32
    %c0_i32_0 = arith.constant 0 : i32
    return %arg0, %c0_i32 : i32, i32
  }
}

</mosaic_0001>

<llo_original>
// kernel: tpu_custom_call.1
$region0: #{tpu_custom_call.1}
  #allocation0 [shape = 'u32[]', space=smem, size = 0x4, offset = 0x4, fixed_abs, tag = 'smem constant byte address 0x4 - core index']
  #allocation1 [shape = 'u32[72,128]{1,0:T(1,128)}', space=vmem, size = 0x9000, scoped, tag = 'internal scratch']
  %s0 = inlined_call_operand.hbm [shape: f32[8,128], index: 0, kind: input, shape index: {}]
  %s1 = inlined_call_operand.hbm [shape: f32[128,1024], index: 1, kind: input, shape index: {}]
  %s2 = inlined_call_operand.hbm [shape: f32[1,1024], index: 2, kind: input, shape index: {}]
  %s3 = inlined_call_operand.hbm [shape: f32[8,1024], index: 3, kind: output, shape index: {}]
  %s4 = sld [smem:[#allocation0]]
  $region34: #{tpu_custom_call.1} parent=0
    _
  %s6 = ssub.s32 1, %s4
  %s7 = scalar_select 0, %s6, %s4
  $region1: #{tpu_custom_call.1} parent=0
    #allocation2 [shape = 'u8[4096]{0}', space=vmem, size = 0x1000, scoped, tag = 'input window, operand 0, single buffered']
    #allocation3 [shape = 's32[1]{0}', space=sflag, size = 0x4, scoped, tag = 'scoped memory for tpu_custom_call.1']
    #allocation4 [shape = 's32[1]{0}', space=sflag, size = 0x4, scoped, tag = 'scoped memory for tpu_custom_call.1']
    #allocation5 [shape = 'u8[524288]{0}', space=vmem, size = 0x80000, scoped, tag = 'input window, operand 1, single buffered']
    #allocation6 [shape = 's32[1]{0}', space=sflag, size = 0x4, scoped, tag = 'scoped memory for tpu_custom_call.1']
    #allocation7 [shape = 'u8[4096]{0}', space=vmem, size = 0x1000, scoped, tag = 'input window, operand 2, single buffered']
    #allocation8 [shape = 'u8[32768]{0}', space=vmem, size = 0x8000, scoped, tag = 'output window, operand 0, single buffered']
    %8 = vsyncpa [#allocation3], 0
    %9 = vsyncpa [#allocation6], 0
    %10 = vsyncpa [#allocation4], 0
    // Predicated region
    $region2: #{tpu_custom_call.1} parent=1 // pred_check
      _
    $region3: #{tpu_custom_call.1} parent=1 // pred_check_branch
      %12 = sbr.rel (0) target = $region5
    $region4: #{tpu_custom_call.1} parent=1 // pred_region
      %14 = vsyncadd [#allocation3], 0
      %s16 = sshll.u32 %s0, 4
      %s17 = int_to_ptr.hbm [resolvable:$true] %s16
      %s18 = sshll.u32 [#allocation2], 4
      %s19 = int_to_ptr.vmem [resolvable:$true] %s18
      %21 = dma.hbm_to_vmem [thread:$0]  %s17, 128, %s19, [#allocation3]
    $region5: #{tpu_custom_call.1} parent=1 // pred_fallthru
      _
    // Predicated region
    $region6: #{tpu_custom_call.1} parent=1 // pred_check
      _
    $region7: #{tpu_custom_call.1} parent=1 // pred_check_branch
      %23 = sbr.rel (0) target = $region9
    $region8: #{tpu_custom_call.1} parent=1 // pred_region
      %25 = vsyncadd [#allocation6], 0
      %s26 = sshll.u32 %s1, 4
      %s27 = int_to_ptr.hbm [resolvable:$true] %s26
      %s28 = sshll.u32 [#allocation5], 4
      %s29 = int_to_ptr.vmem [resolvable:$true] %s28
      %34 = dma.hbm_to_vmem [thread:$0]  %s27, 16384, %s29, [#allocation6], 1024, 1024, 64
    $region9: #{tpu_custom_call.1} parent=1 // pred_fallthru
      _
    // Predicated region
    $region10: #{tpu_custom_call.1} parent=1 // pred_check
      _
    $region11: #{tpu_custom_call.1} parent=1 // pred_check_branch
      %36 = sbr.rel (0) target = $region13
    $region12: #{tpu_custom_call.1} parent=1 // pred_region
      %38 = vsyncadd [#allocation6], 0
      %s40 = sshll.u32 %s2, 4
      %s41 = int_to_ptr.hbm [resolvable:$true] %s40
      %s42 = sshll.u32 [#allocation7], 4
      %s43 = int_to_ptr.vmem [resolvable:$true] %s42
      %45 = dma.hbm_to_vmem [thread:$0]  %s41, 128, %s43, [#allocation6]
    $region13: #{tpu_custom_call.1} parent=1 // pred_fallthru
      _
    // Predicated region
    $region14: #{tpu_custom_call.1} parent=1 // pred_check
      _
    $region15: #{tpu_custom_call.1} parent=1 // pred_check_branch
      %47 = sbr.rel (0) target = $region17
    $region16: #{tpu_custom_call.1} parent=1 // pred_region
      %49 = dma.done [#allocation3], 128
    $region17: #{tpu_custom_call.1} parent=1 // pred_fallthru
      _
    // Predicated region
    $region18: #{tpu_custom_call.1} parent=1 // pred_check
      _
    $region19: #{tpu_custom_call.1} parent=1 // pred_check_branch
      %51 = sbr.rel (0) target = $region21
    $region20: #{tpu_custom_call.1} parent=1 // pred_region
      %53 = dma.done [#allocation6], 16384
    $region21: #{tpu_custom_call.1} parent=1 // pred_fallthru
      _
    // Predicated region
    $region22: #{tpu_custom_call.1} parent=1 // pred_check
      _
    $region23: #{tpu_custom_call.1} parent=1 // pred_check_branch
      %55 = sbr.rel (0) target = $region25
    $region24: #{tpu_custom_call.1} parent=1 // pred_region
      %57 = dma.done [#allocation6], 128
    $region25: #{tpu_custom_call.1} parent=1 // pred_fallthru
      _
    %v58 = vld [vmem:[#allocation2] sm:$0xff]
    %v59 = vpack.c.bf16 %v58, %v58
    %v60 = vld [vmem:[#allocation5] sm:$0xff]
    %v61 = vld [vmem:[#allocation5 + $0x8] sm:$0xff]
    %v62 = vld [vmem:[#allocation5 + $0x10] sm:$0xff]
    %v63 = vld [vmem:[#allocation5 + $0x18] sm:$0xff]
    %v64 = vld [vmem:[#allocation5 + $0x20] sm:$0xff]
    %v65 = vld [vmem:[#allocation5 + $0x28] sm:$0xff]
    %v66 = vld [vmem:[#allocation5 + $0x30] sm:$0xff]
    %v67 = vld [vmem:[#allocation5 + $0x38] sm:$0xff]
    %v68 = vld [vmem:[#allocation5 + $0x40] sm:$0xff]
    %v69 = vld [vmem:[#allocation5 + $0x48] sm:$0xff]
    %v70 = vld [vmem:[#allocation5 + $0x50] sm:$0xff]
    %v71 = vld [vmem:[#allocation5 + $0x58] sm:$0xff]
    %v72 = vld [vmem:[#allocation5 + $0x60] sm:$0xff]
    %v73 = vld [vmem:[#allocation5 + $0x68] sm:$0xff]
    %v74 = vld [vmem:[#allocation5 + $0x70] sm:$0xff]
    %v75 = vld [vmem:[#allocation5 + $0x78] sm:$0xff]
    %v76 = vld [vmem:[#allocation5 + $0x80] sm:$0xff]
    %v77 = vld [vmem:[#allocation5 + $0x88] sm:$0xff]
    %v78 = vld [vmem:[#allocation5 + $0x90] sm:$0xff]
    %v79 = vld [vmem:[#allocation5 + $0x98] sm:$0xff]
    %v80 = vld [vmem:[#allocation5 + $0xa0] sm:$0xff]
    %v81 = vld [vmem:[#allocation5 + $0xa8] sm:$0xff]
    %v82 = vld [vmem:[#allocation5 + $0xb0] sm:$0xff]
    %v83 = vld [vmem:[#allocation5 + $0xb8] sm:$0xff]
    %v84 = vld [vmem:[#allocation5 + $0xc0] sm:$0xff]
    %v85 = vld [vmem:[#allocation5 + $0xc8] sm:$0xff]
    %v86 = vld [vmem:[#allocation5 + $0xd0] sm:$0xff]
    %v87 = vld [vmem:[#allocation5 + $0xd8] sm:$0xff]
    %v88 = vld [vmem:[#allocation5 + $0xe0] sm:$0xff]
    %v89 = vld [vmem:[#allocation5 + $0xe8] sm:$0xff]
    %v90 = vld [vmem:[#allocation5 + $0xf0] sm:$0xff]
    %v91 = vld [vmem:[#allocation5 + $0xf8] sm:$0xff]
    %v92 = vld [vmem:[#allocation5 + $0x100] sm:$0xff]
    %v93 = vld [vmem:[#allocation5 + $0x108] sm:$0xff]
    %v94 = vld [vmem:[#allocation5 + $0x110] sm:$0xff]
    %v95 = vld [vmem:[#allocation5 + $0x118] sm:$0xff]
    %v96 = vld [vmem:[#allocation5 + $0x120] sm:$0xff]
    %v97 = vld [vmem:[#allocation5 + $0x128] sm:$0xff]
    %v98 = vld [vmem:[#allocation5 + $0x130] sm:$0xff]
    %v99 = vld [vmem:[#allocation5 + $0x138] sm:$0xff]
    %v100 = vld [vmem:[#allocation5 + $0x140] sm:$0xff]
    %v101 = vld [vmem:[#allocation5 + $0x148] sm:$0xff]
    %v102 = vld [vmem:[#allocation5 + $0x150] sm:$0xff]
    %v103 = vld [vmem:[#allocation5 + $0x158] sm:$0xff]
    %v104 = vld [vmem:[#allocation5 + $0x160] sm:$0xff]
    %v105 = vld [vmem:[#allocation5 + $0x168] sm:$0xff]
    %v106 = vld [vmem:[#allocation5 + $0x170] sm:$0xff]
    %v107 = vld [vmem:[#allocation5 + $0x178] sm:$0xff]
    %v108 = vld [vmem:[#allocation5 + $0x180] sm:$0xff]
    %v109 = vld [vmem:[#allocation5 + $0x188] sm:$0xff]
    %v110 = vld [vmem:[#allocation5 + $0x190] sm:$0xff]
    %v111 = vld [vmem:[#allocation5 + $0x198] sm:$0xff]
    %v112 = vld [vmem:[#allocation5 + $0x1a0] sm:$0xff]
    %v113 = vld [vmem:[#allocation5 + $0x1a8] sm:$0xff]
    %v114 = vld [vmem:[#allocation5 + $0x1b0] sm:$0xff]
    %v115 = vld [vmem:[#allocation5 + $0x1b8] sm:$0xff]
    %v116 = vld [vmem:[#allocation5 + $0x1c0] sm:$0xff]
    %v117 = vld [vmem:[#allocation5 + $0x1c8] sm:$0xff]
    %v118 = vld [vmem:[#allocation5 + $0x1d0] sm:$0xff]
    %v119 = vld [vmem:[#allocation5 + $0x1d8] sm:$0xff]
    %v120 = vld [vmem:[#allocation5 + $0x1e0] sm:$0xff]
    %v121 = vld [vmem:[#allocation5 + $0x1e8] sm:$0xff]
    %v122 = vld [vmem:[#allocation5 + $0x1f0] sm:$0xff]
    %v123 = vld [vmem:[#allocation5 + $0x1f8] sm:$0xff]
    %v124 = vld [vmem:[#allocation5 + $0x200] sm:$0xff]
    %v125 = vld [vmem:[#allocation5 + $0x208] sm:$0xff]
    %v126 = vld [vmem:[#allocation5 + $0x210] sm:$0xff]
    %v127 = vld [vmem:[#allocation5 + $0x218] sm:$0xff]
    %v128 = vld [vmem:[#allocation5 + $0x220] sm:$0xff]
    %v129 = vld [vmem:[#allocation5 + $0x228] sm:$0xff]
    %v130 = vld [vmem:[#allocation5 + $0x230] sm:$0xff]
    %v131 = vld [vmem:[#allocation5 + $0x238] sm:$0xff]
    %v132 = vld [vmem:[#allocation5 + $0x240] sm:$0xff]
    %v133 = vld [vmem:[#allocation5 + $0x248] sm:$0xff]
    %v134 = vld [vmem:[#allocation5 + $0x250] sm:$0xff]
    %v135 = vld [vmem:[#allocation5 + $0x258] sm:$0xff]
    %v136 = vld [vmem:[#allocation5 + $0x260] sm:$0xff]
    %v137 = vld [vmem:[#allocation5 + $0x268] sm:$0xff]
    %v138 = vld [vmem:[#allocation5 + $0x270] sm:$0xff]
    %v139 = vld [vmem:[#allocation5 + $0x278] sm:$0xff]
    %v140 = vld [vmem:[#allocation5 + $0x280] sm:$0xff]
    %v141 = vld [vmem:[#allocation5 + $0x288] sm:$0xff]
    %v142 = vld [vmem:[#allocation5 + $0x290] sm:$0xff]
    %v143 = vld [vmem:[#allocation5 + $0x298] sm:$0xff]
    %v144 = vld [vmem:[#allocation5 + $0x2a0] sm:$0xff]
    %v145 = vld [vmem:[#allocation5 + $0x2a8] sm:$0xff]
    %v146 = vld [vmem:[#allocation5 + $0x2b0] sm:$0xff]
    %v147 = vld [vmem:[#allocation5 + $0x2b8] sm:$0xff]
    %v148 = vld [vmem:[#allocation5 + $0x2c0] sm:$0xff]
    %v149 = vld [vmem:[#allocation5 + $0x2c8] sm:$0xff]
    %v150 = vld [vmem:[#allocation5 + $0x2d0] sm:$0xff]
    %v151 = vld [vmem:[#allocation5 + $0x2d8] sm:$0xff]
    %v152 = vld [vmem:[#allocation5 + $0x2e0] sm:$0xff]
    %v153 = vld [vmem:[#allocation5 + $0x2e8] sm:$0xff]
    %v154 = vld [vmem:[#allocation5 + $0x2f0] sm:$0xff]
    %v155 = vld [vmem:[#allocation5 + $0x2f8] sm:$0xff]
    %v156 = vld [vmem:[#allocation5 + $0x300] sm:$0xff]
    %v157 = vld [vmem:[#allocation5 + $0x308] sm:$0xff]
    %v158 = vld [vmem:[#allocation5 + $0x310] sm:$0xff]
    %v159 = vld [vmem:[#allocation5 + $0x318] sm:$0xff]
    %v160 = vld [vmem:[#allocation5 + $0x320] sm:$0xff]
    %v161 = vld [vmem:[#allocation5 + $0x328] sm:$0xff]
    %v162 = vld [vmem:[#allocation5 + $0x330] sm:$0xff]
    %v163 = vld [vmem:[#allocation5 + $0x338] sm:$0xff]
    %v164 = vld [vmem:[#allocation5 + $0x340] sm:$0xff]
    %v165 = vld [vmem:[#allocation5 + $0x348] sm:$0xff]
    %v166 = vld [vmem:[#allocation5 + $0x350] sm:$0xff]
    %v167 = vld [vmem:[#allocation5 + $0x358] sm:$0xff]
    %v168 = vld [vmem:[#allocation5 + $0x360] sm:$0xff]
    %v169 = vld [vmem:[#allocation5 + $0x368] sm:$0xff]
    %v170 = vld [vmem:[#allocation5 + $0x370] sm:$0xff]
    %v171 = vld [vmem:[#allocation5 + $0x378] sm:$0xff]
    %v172 = vld [vmem:[#allocation5 + $0x380] sm:$0xff]
    %v173 = vld [vmem:[#allocation5 + $0x388] sm:$0xff]
    %v174 = vld [vmem:[#allocation5 + $0x390] sm:$0xff]
    %v175 = vld [vmem:[#allocation5 + $0x398] sm:$0xff]
    %v176 = vld [vmem:[#allocation5 + $0x3a0] sm:$0xff]
    %v177 = vld [vmem:[#allocation5 + $0x3a8] sm:$0xff]
    %v178 = vld [vmem:[#allocation5 + $0x3b0] sm:$0xff]
    %v179 = vld [vmem:[#allocation5 + $0x3b8] sm:$0xff]
    %v180 = vld [vmem:[#allocation5 + $0x3c0] sm:$0xff]
    %v181 = vld [vmem:[#allocation5 + $0x3c8] sm:$0xff]
    %v182 = vld [vmem:[#allocation5 + $0x3d0] sm:$0xff]
    %v183 = vld [vmem:[#allocation5 + $0x3d8] sm:$0xff]
    %v184 = vld [vmem:[#allocation5 + $0x3e0] sm:$0xff]
    %v185 = vld [vmem:[#allocation5 + $0x3e8] sm:$0xff]
    %v186 = vld [vmem:[#allocation5 + $0x3f0] sm:$0xff]
    %v187 = vld [vmem:[#allocation5 + $0x3f8] sm:$0xff]
    %v188 = vpack.c.bf16 %v68, %v60
    %v189 = vpack.c.bf16 %v69, %v61
    %v190 = vpack.c.bf16 %v70, %v62
    %v191 = vpack.c.bf16 %v71, %v63
    %v192 = vpack.c.bf16 %v72, %v64
    %v193 = vpack.c.bf16 %v73, %v65
    %v194 = vpack.c.bf16 %v74, %v66
    %v195 = vpack.c.bf16 %v75, %v67
    %v196 = vpack.c.bf16 %v84, %v76
    %v197 = vpack.c.bf16 %v85, %v77
    %v198 = vpack.c.bf16 %v86, %v78
    %v199 = vpack.c.bf16 %v87, %v79
    %v200 = vpack.c.bf16 %v88, %v80
    %v201 = vpack.c.bf16 %v89, %v81
    %v202 = vpack.c.bf16 %v90, %v82
    %v203 = vpack.c.bf16 %v91, %v83
    %v204 = vpack.c.bf16 %v100, %v92
    %v205 = vpack.c.bf16 %v101, %v93
    %v206 = vpack.c.bf16 %v102, %v94
    %v207 = vpack.c.bf16 %v103, %v95
    %v208 = vpack.c.bf16 %v104, %v96
    %v209 = vpack.c.bf16 %v105, %v97
    %v210 = vpack.c.bf16 %v106, %v98
    %v211 = vpack.c.bf16 %v107, %v99
    %v212 = vpack.c.bf16 %v116, %v108
    %v213 = vpack.c.bf16 %v117, %v109
    %v214 = vpack.c.bf16 %v118, %v110
    %v215 = vpack.c.bf16 %v119, %v111
    %v216 = vpack.c.bf16 %v120, %v112
    %v217 = vpack.c.bf16 %v121, %v113
    %v218 = vpack.c.bf16 %v122, %v114
    %v219 = vpack.c.bf16 %v123, %v115
    %v220 = vpack.c.bf16 %v132, %v124
    %v221 = vpack.c.bf16 %v133, %v125
    %v222 = vpack.c.bf16 %v134, %v126
    %v223 = vpack.c.bf16 %v135, %v127
    %v224 = vpack.c.bf16 %v136, %v128
    %v225 = vpack.c.bf16 %v137, %v129
    %v226 = vpack.c.bf16 %v138, %v130
    %v227 = vpack.c.bf16 %v139, %v131
    %v228 = vpack.c.bf16 %v148, %v140
    %v229 = vpack.c.bf16 %v149, %v141
    %v230 = vpack.c.bf16 %v150, %v142
    %v231 = vpack.c.bf16 %v151, %v143
    %v232 = vpack.c.bf16 %v152, %v144
    %v233 = vpack.c.bf16 %v153, %v145
    %v234 = vpack.c.bf16 %v154, %v146
    %v235 = vpack.c.bf16 %v155, %v147
    %v236 = vpack.c.bf16 %v164, %v156
    %v237 = vpack.c.bf16 %v165, %v157
    %v238 = vpack.c.bf16 %v166, %v158
    %v239 = vpack.c.bf16 %v167, %v159
    %v240 = vpack.c.bf16 %v168, %v160
    %v241 = vpack.c.bf16 %v169, %v161
    %v242 = vpack.c.bf16 %v170, %v162
    %v243 = vpack.c.bf16 %v171, %v163
    %v244 = vpack.c.bf16 %v180, %v172
    %v245 = vpack.c.bf16 %v181, %v173
    %v246 = vpack.c.bf16 %v182, %v174
    %v247 = vpack.c.bf16 %v183, %v175
    %v248 = vpack.c.bf16 %v184, %v176
    %v249 = vpack.c.bf16 %v185, %v177
    %v250 = vpack.c.bf16 %v186, %v178
    %v251 = vpack.c.bf16 %v187, %v179
    %v252 = vld [vmem:[#allocation7] sm:$0xff]
    %v254 = vperm.slane %v252, 0
    %v255 = vperm.slane %v252, 1
    %v256 = vperm.slane %v252, 2
    %v257 = vperm.slane %v252, 3
    %v258 = vperm.slane %v252, 4
    %v259 = vperm.slane %v252, 5
    %v260 = vperm.slane %v252, 6
    %v261 = vperm.slane %v252, 7
    %270 = vmatpush.bf16.msra.mxu0 %v244
    %271 = vmatpush.bf16.msra.mxu0 %v236
    %272 = vmatpush.bf16.msra.mxu0 %v228
    %273 = vmatpush.bf16.msra.mxu0 %v220
    %274 = vmatpush.bf16.msra.mxu0 %v212
    %275 = vmatpush.bf16.msra.mxu0 %v204
    %276 = vmatpush.bf16.msra.mxu0 %v196
    %277 = vmatpush.bf16.msra.mxu0 %v188
    %278 = vmatmul.bf16.gmra.mxu0 %v59
    %v279 = vpop.f32.mrf.mxu0
    %v280 = vadd.f32 %v254, %v279
    %v281 = vpop.f32.mrf.mxu0
    %282 = vdwg.mxu0
    %283 = vmatpush.bf16.msra.mxu0 %v245
    %284 = vmatpush.bf16.msra.mxu0 %v237
    %285 = vmatpush.bf16.msra.mxu0 %v229
    %286 = vmatpush.bf16.msra.mxu0 %v221
    %287 = vmatpush.bf16.msra.mxu0 %v213
    %288 = vmatpush.bf16.msra.mxu0 %v205
    %289 = vmatpush.bf16.msra.mxu0 %v197
    %290 = vmatpush.bf16.msra.mxu0 %v189
    %291 = vmatmul.bf16.gmra.mxu0 %v59
    %v292 = vpop.f32.mrf.mxu0
    %v293 = vadd.f32 %v255, %v292
    %v294 = vpop.f32.mrf.mxu0
    %295 = vdwg.mxu0
    %296 = vmatpush.bf16.msra.mxu0 %v246
    %297 = vmatpush.bf16.msra.mxu0 %v238
    %298 = vmatpush.bf16.msra.mxu0 %v230
    %299 = vmatpush.bf16.msra.mxu0 %v222
    %300 = vmatpush.bf16.msra.mxu0 %v214
    %301 = vmatpush.bf16.msra.mxu0 %v206
    %302 = vmatpush.bf16.msra.mxu0 %v198
    %303 = vmatpush.bf16.msra.mxu0 %v190
    %304 = vmatmul.bf16.gmra.mxu0 %v59
    %v305 = vpop.f32.mrf.mxu0
    %v306 = vadd.f32 %v256, %v305
    %v307 = vpop.f32.mrf.mxu0
    %308 = vdwg.mxu0
    %309 = vmatpush.bf16.msra.mxu0 %v247
    %310 = vmatpush.bf16.msra.mxu0 %v239
    %311 = vmatpush.bf16.msra.mxu0 %v231
    %312 = vmatpush.bf16.msra.mxu0 %v223
    %313 = vmatpush.bf16.msra.mxu0 %v215
    %314 = vmatpush.bf16.msra.mxu0 %v207
    %315 = vmatpush.bf16.msra.mxu0 %v199
    %316 = vmatpush.bf16.msra.mxu0 %v191
    %317 = vmatmul.bf16.gmra.mxu0 %v59
    %v318 = vpop.f32.mrf.mxu0
    %v319 = vadd.f32 %v257, %v318
    %v320 = vpop.f32.mrf.mxu0
    %321 = vdwg.mxu0
    %322 = vmatpush.bf16.msra.mxu0 %v248
    %323 = vmatpush.bf16.msra.mxu0 %v240
    %324 = vmatpush.bf16.msra.mxu0 %v232
    %325 = vmatpush.bf16.msra.mxu0 %v224
    %326 = vmatpush.bf16.msra.mxu0 %v216
    %327 = vmatpush.bf16.msra.mxu0 %v208
    %328 = vmatpush.bf16.msra.mxu0 %v200
    %329 = vmatpush.bf16.msra.mxu0 %v192
    %330 = vmatmul.bf16.gmra.mxu0 %v59
    %v331 = vpop.f32.mrf.mxu0
    %v332 = vadd.f32 %v258, %v331
    %v333 = vpop.f32.mrf.mxu0
    %334 = vdwg.mxu0
    %335 = vmatpush.bf16.msra.mxu0 %v249
    %336 = vmatpush.bf16.msra.mxu0 %v241
    %337 = vmatpush.bf16.msra.mxu0 %v233
    %338 = vmatpush.bf16.msra.mxu0 %v225
    %339 = vmatpush.bf16.msra.mxu0 %v217
    %340 = vmatpush.bf16.msra.mxu0 %v209
    %341 = vmatpush.bf16.msra.mxu0 %v201
    %342 = vmatpush.bf16.msra.mxu0 %v193
    %343 = vmatmul.bf16.gmra.mxu0 %v59
    %v344 = vpop.f32.mrf.mxu0
    %v345 = vadd.f32 %v259, %v344
    %v346 = vpop.f32.mrf.mxu0
    %347 = vdwg.mxu0
    %348 = vmatpush.bf16.msra.mxu0 %v250
    %349 = vmatpush.bf16.msra.mxu0 %v242
    %350 = vmatpush.bf16.msra.mxu0 %v234
    %351 = vmatpush.bf16.msra.mxu0 %v226
    %352 = vmatpush.bf16.msra.mxu0 %v218
    %353 = vmatpush.bf16.msra.mxu0 %v210
    %354 = vmatpush.bf16.msra.mxu0 %v202
    %355 = vmatpush.bf16.msra.mxu0 %v194
    %356 = vmatmul.bf16.gmra.mxu0 %v59
    %v357 = vpop.f32.mrf.mxu0
    %v358 = vadd.f32 %v260, %v357
    %v359 = vpop.f32.mrf.mxu0
    %360 = vdwg.mxu0
    %361 = vmatpush.bf16.msra.mxu0 %v251
    %362 = vmatpush.bf16.msra.mxu0 %v243
    %363 = vmatpush.bf16.msra.mxu0 %v235
    %364 = vmatpush.bf16.msra.mxu0 %v227
    %365 = vmatpush.bf16.msra.mxu0 %v219
    %366 = vmatpush.bf16.msra.mxu0 %v211
    %367 = vmatpush.bf16.msra.mxu0 %v203
    %368 = vmatpush.bf16.msra.mxu0 %v195
    %369 = vmatmul.bf16.gmra.mxu0 %v59
    %v370 = vpop.f32.mrf.mxu0
    %v371 = vadd.f32 %v261, %v370
    %v372 = vpop.f32.mrf.mxu0
    %373 = vdwg.mxu0
    %374 = vst [vmem:[#allocation8] sm:$0xff] %v280
    %375 = vst [vmem:[#allocation8 + $0x8] sm:$0xff] %v293
    %376 = vst [vmem:[#allocation8 + $0x10] sm:$0xff] %v306
    %377 = vst [vmem:[#allocation8 + $0x18] sm:$0xff] %v319
    %378 = vst [vmem:[#allocation8 + $0x20] sm:$0xff] %v332
    %379 = vst [vmem:[#allocation8 + $0x28] sm:$0xff] %v345
    %380 = vst [vmem:[#allocation8 + $0x30] sm:$0xff] %v358
    %381 = vst [vmem:[#allocation8 + $0x38] sm:$0xff] %v371
    // Predicated region
    $region26: #{tpu_custom_call.1} parent=1 // pred_check
      _
    $region27: #{tpu_custom_call.1} parent=1 // pred_check_branch
      %383 = sbr.rel (0) target = $region29
    $region28: #{tpu_custom_call.1} parent=1 // pred_region
      %385 = vsyncadd [#allocation4], 0
      %s387 = sshll.u32 [#allocation8], 4
      %s388 = int_to_ptr.vmem [resolvable:$true] %s387
      %s389 = sshll.u32 %s3, 4
      %s390 = int_to_ptr.hbm [resolvable:$true] %s389
      %392 = dma.vmem_to_hbm [thread:$0]  %s388, 1024, %s390, [#allocation4]
    $region29: #{tpu_custom_call.1} parent=1 // pred_fallthru
      _
    // Predicated region
    $region30: #{tpu_custom_call.1} parent=1 // pred_check
      _
    $region31: #{tpu_custom_call.1} parent=1 // pred_check_branch
      %394 = sbr.rel (0) target = $region33
    $region32: #{tpu_custom_call.1} parent=1 // pred_region
      %396 = dma.done [#allocation4], 1024
    $region33: #{tpu_custom_call.1} parent=1 // pred_fallthru
      _
    %397 = vsyncpa [#allocation3], 1
    %398 = vsyncpa [#allocation6], 1
    %399 = vsyncpa [#allocation4], 1

</llo_original>
